<compile_context>
chip_gen: v7x
topology: tpu7x:2x2x1
jax: 0.10.0
libtpu: 0.0.40
codegen_flags: <defaults>
</compile_context>

<pallas_src>
import functools

import jax
import jax.numpy as jnp
from jax.experimental import pallas as pl
from jax.experimental.pallas import tpu as pltpu


def _round_up(n, m):
    return ((n + m - 1) // m) * m


# --------------------------- parameter handling ---------------------------- #

def make_sparse_encoder_params(key, in_size, latent_size, num_layers):
    """Deterministic init matching nn.Linear default (uniform +-1/sqrt(fan_in))."""
    layer_sizes = [in_size] + [
        in_size - (i + 1) * (in_size - latent_size) // num_layers
        for i in range(num_layers)
    ]
    params = []
    for i in range(len(layer_sizes) - 1):
        fan_in, fan_out = layer_sizes[i], layer_sizes[i + 1]
        key, kw, kb = jax.random.split(key, 3)
        bound = 1.0 / (fan_in ** 0.5)
        # weight stored already transposed: (in, out)
        w_t = jax.random.uniform(kw, (fan_in, fan_out), jnp.float32, -bound, bound)
        b = jax.random.uniform(kb, (fan_out,), jnp.float32, -bound, bound)
        params.append((w_t, b))
    return params, layer_sizes


def pack_encoder_params(params, layer_sizes):
    """Zero-pad + stack all layer weights/biases into lane-aligned VMEM blocks."""
    P = _round_up(max(layer_sizes), 128)          # one padded width for all layers
    L = len(params)
    w_stack = jnp.zeros((L, P, P), jnp.float32)
    b_stack = jnp.zeros((L, 1, P), jnp.float32)
    for l, (w_t, b) in enumerate(params):
        fi, fo = w_t.shape
        w_stack = w_stack.at[l, :fi, :fo].set(w_t)
        b_stack = b_stack.at[l, 0, :fo].set(b)
    return w_stack, b_stack


# ------------------------------ fused forward ------------------------------ #

@functools.partial(jax.jit, static_argnames=("layer_sizes",))
def sparse_encoder_forward(w_stack, b_stack, x, *, layer_sizes):
    """Forward pass: returns (final_activation, list_of_feature_maps).

    Semantics match SparseEncoder.forward with use_bn=False / use_dropout=False.
    """
    B = x.shape[0]
    if x.ndim > 2:
        x = x.reshape(B, -1)                       # torch .view(B, -1)

    L, P, _ = w_stack.shape
    B_pad = max(8, _round_up(B, 8))                # sublane-aligned batch
    in_f = layer_sizes[0]

    # Zero-pad input into an (8,128)-aligned block; padded rows/cols are inert
    # because the padded weight rows/cols are zero.
    x_pad = jnp.zeros((B_pad, P), jnp.float32).at[:B, :in_f].set(
        x.astype(jnp.float32))

    def kernel(x_ref, w_ref, b_ref, o_ref):
        # x_ref: (B_pad, P)  w_ref: (L, P, P)  b_ref: (L, 1, P)  o_ref: (L, B_pad, P)
        act = x_ref[...]
        for l in range(L):                         # unrolled at trace time
            y = jnp.dot(act, w_ref[l], preferred_element_type=jnp.float32)
            act = jax.nn.sigmoid(y + b_ref[l])     # bias (1, P) broadcasts over rows
            o_ref[l] = act                         # unmasked (8k, 128m) store

    slab = pl.pallas_call(
        kernel,
        out_shape=jax.ShapeDtypeStruct((L, B_pad, P), jnp.float32),
        in_specs=[
            pl.BlockSpec((B_pad, P), lambda: (0, 0),
                         memory_space=pltpu.MemorySpace.VMEM),
            pl.BlockSpec((L, P, P), lambda: (0, 0, 0),
                         memory_space=pltpu.MemorySpace.VMEM),
            pl.BlockSpec((L, 1, P), lambda: (0, 0, 0),
                         memory_space=pltpu.MemorySpace.VMEM),
        ],
        out_specs=pl.BlockSpec((L, B_pad, P), lambda: (0, 0, 0),
                               memory_space=pltpu.MemorySpace.VMEM),
    )(x_pad, w_stack, b_stack)

    # Slice the valid (B, out_f) region of each layer's feature map.
    feature_maps = [slab[l, :B, :layer_sizes[l + 1]] for l in range(L)]
    # TODO(synk): use_bn / use_dropout branches not implemented (module defaults are False)
    return feature_maps[-1], feature_maps


# --------------------------------- main ------------------------------------ #

if __name__ == "__main__":
    key = jax.random.PRNGKey(0)

    in_size, latent_size, num_layers = 32, 8, 3
    batch, channels, length = 2, 4, 8              # 4 * 8 = 32 == in_size after flatten

    kparam, kx = jax.random.split(key)
    params, layer_sizes = make_sparse_encoder_params(
        kparam, in_size, latent_size, num_layers)
    w_stack, b_stack = pack_encoder_params(params, layer_sizes)

    x = jax.random.normal(kx, (batch, channels, length), jnp.float32)

    out, feats = sparse_encoder_forward(
        w_stack, b_stack, x, layer_sizes=tuple(layer_sizes))
    out = jax.block_until_ready(out)
    feats = [jax.block_until_ready(f) for f in feats]

    # sanity: shapes follow layer_sizes and output is in [0, 1] from sigmoid
    assert out.shape == (batch, layer_sizes[-1]), out.shape
    for f, sz in zip(feats, layer_sizes[1:]):
        assert f.shape == (batch, sz), (f.shape, sz)
    assert bool(jnp.all((out >= 0.0) & (out <= 1.0)))

    # cross-check every feature map against a pure-JAX reference
    xr = x.reshape(batch, -1)
    for (w_t, b), f in zip(params, feats):
        xr = jax.nn.sigmoid(xr @ w_t + b)
        assert bool(jnp.allclose(f, xr, atol=1e-5, rtol=1e-5))
    assert bool(jnp.allclose(out, xr, atol=1e-5, rtol=1e-5))

    print("KERNEL_OK")
</pallas_src>

<mosaic_0001>
module attributes {stable_mosaic.version = 11 : i64} {
  func.func @kernel(%arg0: memref<8x128xf32, #tpu.memory_space<vmem>>, %arg1: memref<3x128x128xf32, #tpu.memory_space<vmem>>, %arg2: memref<3x1x128xf32, #tpu.memory_space<vmem>>, %arg3: memref<3x8x128xf32, #tpu.memory_space<vmem>>) attributes {dimension_semantics = [], scalar_prefetch = 0 : i64, scratch_operands = 0 : i64, tpu.core_type = #tpu.core_type<tc>} {
    %c0 = arith.constant 0 : index
    %c0_0 = arith.constant 0 : index
    %0 = vector.load %arg0[%c0, %c0_0] : memref<8x128xf32, #tpu.memory_space<vmem>>, vector<8x128xf32>
    %c0_1 = arith.constant 0 : index
    %c0_2 = arith.constant 0 : index
    %c0_3 = arith.constant 0 : index
    %1 = vector.load %arg1[%c0_1, %c0_2, %c0_3] : memref<3x128x128xf32, #tpu.memory_space<vmem>>, vector<1x128x128xf32>
    %2 = vector.shape_cast %1 : vector<1x128x128xf32> to vector<128x128xf32>
    %cst = arith.constant dense<0.000000e+00> : vector<8x128xf32>
    %3 = tpu.matmul %0, %2, %cst {dimension_numbers = #tpu.dot_dimension_numbers<[1], [0], [0], [1], [0, 0, 1, 1], [], []>} : vector<8x128xf32>, vector<128x128xf32>, vector<8x128xf32> -> vector<8x128xf32>
    %c0_4 = arith.constant 0 : index
    %c0_5 = arith.constant 0 : index
    %c0_6 = arith.constant 0 : index
    %4 = vector.load %arg2[%c0_4, %c0_5, %c0_6] : memref<3x1x128xf32, #tpu.memory_space<vmem>>, vector<1x1x128xf32>
    %5 = vector.shape_cast %4 : vector<1x1x128xf32> to vector<1x128xf32>
    %6 = vector.broadcast %5 : vector<1x128xf32> to vector<8x128xf32>
    %7 = arith.addf %3, %6 : vector<8x128xf32>
    %8 = arith.negf %7 : vector<8x128xf32>
    %9 = math.exp %8 : vector<8x128xf32>
    %cst_7 = arith.constant 1.000000e+00 : f32
    %10 = vector.broadcast %cst_7 : f32 to vector<8x128xf32>
    %11 = arith.addf %10, %9 : vector<8x128xf32>
    %12 = arith.divf %10, %11 : vector<8x128xf32>
    %c0_8 = arith.constant 0 : index
    %c0_9 = arith.constant 0 : index
    %c0_10 = arith.constant 0 : index
    %13 = vector.load %arg3[%c0_8, %c0_9, %c0_10] : memref<3x8x128xf32, #tpu.memory_space<vmem>>, vector<1x8x128xf32>
    %14 = vector.shape_cast %13 : vector<1x8x128xf32> to vector<8x128xf32>
    %15 = vector.shape_cast %12 : vector<8x128xf32> to vector<1x8x128xf32>
    tpu.vector_store %arg3[%c0_8, %c0_9, %c0_10], %15 {strides = array<i32>} : memref<3x8x128xf32, #tpu.memory_space<vmem>>, vector<1x8x128xf32>,
    %c1 = arith.constant 1 : index
    %c0_11 = arith.constant 0 : index
    %c0_12 = arith.constant 0 : index
    %16 = vector.load %arg1[%c1, %c0_11, %c0_12] : memref<3x128x128xf32, #tpu.memory_space<vmem>>, vector<1x128x128xf32>
    %17 = vector.shape_cast %16 : vector<1x128x128xf32> to vector<128x128xf32>
    %cst_13 = arith.constant dense<0.000000e+00> : vector<8x128xf32>
    %18 = tpu.matmul %12, %17, %cst_13 {dimension_numbers = #tpu.dot_dimension_numbers<[1], [0], [0], [1], [0, 0, 1, 1], [], []>} : vector<8x128xf32>, vector<128x128xf32>, vector<8x128xf32> -> vector<8x128xf32>
    %c1_14 = arith.constant 1 : index
    %c0_15 = arith.constant 0 : index
    %c0_16 = arith.constant 0 : index
    %19 = vector.load %arg2[%c1_14, %c0_15, %c0_16] : memref<3x1x128xf32, #tpu.memory_space<vmem>>, vector<1x1x128xf32>
    %20 = vector.shape_cast %19 : vector<1x1x128xf32> to vector<1x128xf32>
    %21 = vector.broadcast %20 : vector<1x128xf32> to vector<8x128xf32>
    %22 = arith.addf %18, %21 : vector<8x128xf32>
    %23 = arith.negf %22 : vector<8x128xf32>
    %24 = math.exp %23 : vector<8x128xf32>
    %cst_17 = arith.constant 1.000000e+00 : f32
    %25 = vector.broadcast %cst_17 : f32 to vector<8x128xf32>
    %26 = arith.addf %25, %24 : vector<8x128xf32>
    %27 = arith.divf %25, %26 : vector<8x128xf32>
    %c1_18 = arith.constant 1 : index
    %c0_19 = arith.constant 0 : index
    %c0_20 = arith.constant 0 : index
    %28 = vector.load %arg3[%c1_18, %c0_19, %c0_20] : memref<3x8x128xf32, #tpu.memory_space<vmem>>, vector<1x8x128xf32>
    %29 = vector.shape_cast %28 : vector<1x8x128xf32> to vector<8x128xf32>
    %30 = vector.shape_cast %27 : vector<8x128xf32> to vector<1x8x128xf32>
    tpu.vector_store %arg3[%c1_18, %c0_19, %c0_20], %30 {strides = array<i32>} : memref<3x8x128xf32, #tpu.memory_space<vmem>>, vector<1x8x128xf32>,
    %c2 = arith.constant 2 : index
    %c0_21 = arith.constant 0 : index
    %c0_22 = arith.constant 0 : index
    %31 = vector.load %arg1[%c2, %c0_21, %c0_22] : memref<3x128x128xf32, #tpu.memory_space<vmem>>, vector<1x128x128xf32>
    %32 = vector.shape_cast %31 : vector<1x128x128xf32> to vector<128x128xf32>
    %cst_23 = arith.constant dense<0.000000e+00> : vector<8x128xf32>
    %33 = tpu.matmul %27, %32, %cst_23 {dimension_numbers = #tpu.dot_dimension_numbers<[1], [0], [0], [1], [0, 0, 1, 1], [], []>} : vector<8x128xf32>, vector<128x128xf32>, vector<8x128xf32> -> vector<8x128xf32>
    %c2_24 = arith.constant 2 : index
    %c0_25 = arith.constant 0 : index
    %c0_26 = arith.constant 0 : index
    %34 = vector.load %arg2[%c2_24, %c0_25, %c0_26] : memref<3x1x128xf32, #tpu.memory_space<vmem>>, vector<1x1x128xf32>
    %35 = vector.shape_cast %34 : vector<1x1x128xf32> to vector<1x128xf32>
    %36 = vector.broadcast %35 : vector<1x128xf32> to vector<8x128xf32>
    %37 = arith.addf %33, %36 : vector<8x128xf32>
    %38 = arith.negf %37 : vector<8x128xf32>
    %39 = math.exp %38 : vector<8x128xf32>
    %cst_27 = arith.constant 1.000000e+00 : f32
    %40 = vector.broadcast %cst_27 : f32 to vector<8x128xf32>
    %41 = arith.addf %40, %39 : vector<8x128xf32>
    %42 = arith.divf %40, %41 : vector<8x128xf32>
    %c2_28 = arith.constant 2 : index
    %c0_29 = arith.constant 0 : index
    %c0_30 = arith.constant 0 : index
    %43 = vector.load %arg3[%c2_28, %c0_29, %c0_30] : memref<3x8x128xf32, #tpu.memory_space<vmem>>, vector<1x8x128xf32>
    %44 = vector.shape_cast %43 : vector<1x8x128xf32> to vector<8x128xf32>
    %45 = vector.shape_cast %42 : vector<8x128xf32> to vector<1x8x128xf32>
    tpu.vector_store %arg3[%c2_28, %c0_29, %c0_30], %45 {strides = array<i32>} : memref<3x8x128xf32, #tpu.memory_space<vmem>>, vector<1x8x128xf32>,
    return
  }
}

</mosaic_0001>

<llo_original>
// kernel: sparse_encoder_forward.1
$region0: #{sparse_encoder_forward.1}
  #allocation0 [shape = 'u32[]', space=smem, size = 0x4, offset = 0x4, fixed_abs, tag = 'smem constant byte address 0x4 - core index']
  #allocation1 [shape = 'u32[144,128]{1,0:T(1,128)}', space=vmem, size = 0x12000, scoped, tag = 'internal scratch']
  %s0 = inlined_call_operand.vmem [shape: f32[8,128], index: 0, kind: input, shape index: {}]
  %s1 = inlined_call_operand.hbm [shape: f32[3,128,128], index: 1, kind: input, shape index: {}]
  %s2 = inlined_call_operand.vmem [shape: f32[3,1,128], index: 2, kind: input, shape index: {}]
  %s3 = inlined_call_operand.vmem [shape: f32[3,8,128], index: 3, kind: output, shape index: {}]
  %s4 = sld [smem:[#allocation0]]
  $region26: #{sparse_encoder_forward.1} parent=0
    _
  %s6 = ssub.s32 1, %s4
  %s7 = scalar_select 0, %s6, %s4
  $region1: #{sparse_encoder_forward.1} parent=0
    #allocation2 [shape = 'u8[196608]{0}', space=vmem, size = 0x30000, scoped, tag = 'input window, operand 1, single buffered']
    #allocation3 [shape = 's32[1]{0}', space=sflag, size = 0x4, scoped, tag = 'scoped memory for sparse_encoder_forward.1']
    %8 = vsyncpa [#allocation3], 0
    // Predicated region
    $region2: #{sparse_encoder_forward.1} parent=1 // pred_check
      _
    $region3: #{sparse_encoder_forward.1} parent=1 // pred_check_branch
      %10 = sbr.rel (0) target = $region5
    $region4: #{sparse_encoder_forward.1} parent=1 // pred_region
      _
    $region5: #{sparse_encoder_forward.1} parent=1 // pred_fallthru
      _
    // Predicated region
    $region6: #{sparse_encoder_forward.1} parent=1 // pred_check
      _
    $region7: #{sparse_encoder_forward.1} parent=1 // pred_check_branch
      %12 = sbr.rel (0) target = $region9
    $region8: #{sparse_encoder_forward.1} parent=1 // pred_region
      %s14 = ssub.s32 6144, 6144
      %15 = vsyncadd [#allocation3], %s14
      %s16 = sshll.u32 [#allocation2], 4
      %s17 = int_to_ptr.vmem [resolvable:$true] %s16
      %22 = dma.hbm_to_vmem [thread:$0]  %s1, 6144, %s17, [#allocation3], 128, 128, 8
    $region9: #{sparse_encoder_forward.1} parent=1 // pred_fallthru
      _
    // Predicated region
    $region10: #{sparse_encoder_forward.1} parent=1 // pred_check
      _
    $region11: #{sparse_encoder_forward.1} parent=1 // pred_check_branch
      %24 = sbr.rel (0) target = $region13
    $region12: #{sparse_encoder_forward.1} parent=1 // pred_region
      _
    $region13: #{sparse_encoder_forward.1} parent=1 // pred_fallthru
      _
    // Predicated region
    $region14: #{sparse_encoder_forward.1} parent=1 // pred_check
      _
    $region15: #{sparse_encoder_forward.1} parent=1 // pred_check_branch
      %26 = sbr.rel (0) target = $region17
    $region16: #{sparse_encoder_forward.1} parent=1 // pred_region
      %27 = dma.done [#allocation3], 6144
    $region17: #{sparse_encoder_forward.1} parent=1 // pred_fallthru
      _
    %v28 = vld [vmem:[%s0] sm:$0xff]
    %v29 = vld [vmem:[#allocation2] sm:$0xff]
    %v30 = vld [vmem:[#allocation2 + $0x8] sm:$0xff]
    %v31 = vld [vmem:[#allocation2 + $0x10] sm:$0xff]
    %v32 = vld [vmem:[#allocation2 + $0x18] sm:$0xff]
    %v33 = vld [vmem:[#allocation2 + $0x20] sm:$0xff]
    %v34 = vld [vmem:[#allocation2 + $0x28] sm:$0xff]
    %v35 = vld [vmem:[#allocation2 + $0x30] sm:$0xff]
    %v36 = vld [vmem:[#allocation2 + $0x38] sm:$0xff]
    %v37 = vld [vmem:[#allocation2 + $0x40] sm:$0xff]
    %v38 = vld [vmem:[#allocation2 + $0x48] sm:$0xff]
    %v39 = vld [vmem:[#allocation2 + $0x50] sm:$0xff]
    %v40 = vld [vmem:[#allocation2 + $0x58] sm:$0xff]
    %v41 = vld [vmem:[#allocation2 + $0x60] sm:$0xff]
    %v42 = vld [vmem:[#allocation2 + $0x68] sm:$0xff]
    %v43 = vld [vmem:[#allocation2 + $0x70] sm:$0xff]
    %v44 = vld [vmem:[#allocation2 + $0x78] sm:$0xff]
    %v45 = vld [vmem:[%s2] sm:$0x1]
    %v47 = vlaneseq
    %v48 = vshrl.u32 %v47, 7
    %v49 = vsub.s32 0, %v48
    %v50 = vrot.slane %v45, %v49
    %52 = vmatprep.subr.mxu0 0.0
    %53 = vmatpush1.msra.mxu0 %v29
    %54 = vmatprep.subr.mxu0 0.0
    %55 = vmatpush1.msra.mxu0 %v30
    %56 = vmatprep.subr.mxu0 0.0
    %57 = vmatpush1.msra.mxu0 %v31
    %58 = vmatprep.subr.mxu0 0.0
    %59 = vmatpush1.msra.mxu0 %v32
    %60 = vmatprep.subr.mxu0 0.0
    %61 = vmatpush1.msra.mxu0 %v33
    %62 = vmatprep.subr.mxu0 0.0
    %63 = vmatpush1.msra.mxu0 %v34
    %64 = vmatprep.subr.mxu0 0.0
    %65 = vmatpush1.msra.mxu0 %v35
    %66 = vmatprep.subr.mxu0 0.0
    %67 = vmatpush1.msra.mxu0 %v36
    %68 = vmatprep.subr.mxu0 0.0
    %69 = vmatpush1.msra.mxu0 %v37
    %70 = vmatprep.subr.mxu0 0.0
    %71 = vmatpush1.msra.mxu0 %v38
    %72 = vmatprep.subr.mxu0 0.0
    %73 = vmatpush1.msra.mxu0 %v39
    %74 = vmatprep.subr.mxu0 0.0
    %75 = vmatpush1.msra.mxu0 %v40
    %76 = vmatprep.subr.mxu0 0.0
    %77 = vmatpush1.msra.mxu0 %v41
    %78 = vmatprep.subr.mxu0 0.0
    %79 = vmatpush1.msra.mxu0 %v42
    %80 = vmatprep.subr.mxu0 0.0
    %81 = vmatpush1.msra.mxu0 %v43
    %82 = vmatprep.subr.mxu0 0.0
    %83 = vmatpush1.msra.mxu0 %v44
    %84 = vmatprep.subr.mxu0 0.0
    %85 = vmatpush1.msra.mxu0 0.0
    %86 = vmatprep.subr.mxu0 0.0
    %87 = vmatpush1.msra.mxu0 0.0
    %88 = vmatprep.subr.mxu0 0.0
    %89 = vmatpush1.msra.mxu0 0.0
    %90 = vmatprep.subr.mxu0 0.0
    %91 = vmatpush1.msra.mxu0 0.0
    %92 = vmatprep.subr.mxu0 0.0
    %93 = vmatpush1.msra.mxu0 0.0
    %94 = vmatprep.subr.mxu0 0.0
    %95 = vmatpush1.msra.mxu0 0.0
    %96 = vmatprep.subr.mxu0 0.0
    %97 = vmatpush1.msra.mxu0 0.0
    %98 = vmatprep.subr.mxu0 0.0
    %99 = vmatpush1.msra.mxu0 0.0
    %100 = vmatprep.subr.mxu0 0.0
    %101 = vmatpush1.msra.mxu0 0.0
    %102 = vmatprep.subr.mxu0 0.0
    %103 = vmatpush1.msra.mxu0 0.0
    %104 = vmatprep.subr.mxu0 0.0
    %105 = vmatpush1.msra.mxu0 0.0
    %106 = vmatprep.subr.mxu0 0.0
    %107 = vmatpush1.msra.mxu0 0.0
    %108 = vmatprep.subr.mxu0 0.0
    %109 = vmatpush1.msra.mxu0 0.0
    %110 = vmatprep.subr.mxu0 0.0
    %111 = vmatpush1.msra.mxu0 0.0
    %112 = vmatprep.subr.mxu0 0.0
    %113 = vmatpush1.msra.mxu0 0.0
    %114 = vmatprep.subr.mxu0 0.0
    %115 = vmatpush1.msra.mxu0 0.0
    %116 = vmatprep.mubr.f32.mxu0 0.0
    %117 = vmatmul.mubr.f32.gmra.mrb[0].mxu0 %v28
    %v118 = vpop.f32.mrb[0].mxu0
    %v119 = vadd.f32 %v50, %v118
    %v120 = vpop.f32.mrb[0].mxu0
    %121 = vdwg.mxu0
    %v122 = vxor.u32 %v119, 2147483648
    %v123 = vmul.f32 %v122, 1.442695
    %v124 = vpow.pop %v123
    %v125 = vadd.f32 %v124, 1.0
    %v126 = vrcp.pop %v125
    %v127 = vmul.f32 1.0, %v126
    %128 = vst [vmem:[%s3] sm:$0xff] %v127
    %s129 = scalar_lea.vmem [#allocation2], 128
    %v130 = vld [vmem:[%s129] sm:$0xff]
    %v131 = vld [vmem:[%s129 + $0x8] sm:$0xff]
    %v132 = vld [vmem:[%s129 + $0x10] sm:$0xff]
    %v133 = vld [vmem:[%s129 + $0x18] sm:$0xff]
    %v134 = vld [vmem:[%s129 + $0x20] sm:$0xff]
    %v135 = vld [vmem:[%s129 + $0x28] sm:$0xff]
    %v136 = vld [vmem:[%s129 + $0x30] sm:$0xff]
    %v137 = vld [vmem:[%s129 + $0x38] sm:$0xff]
    %v138 = vld [vmem:[%s129 + $0x40] sm:$0xff]
    %v139 = vld [vmem:[%s129 + $0x48] sm:$0xff]
    %v140 = vld [vmem:[%s129 + $0x50] sm:$0xff]
    %v141 = vld [vmem:[%s129 + $0x58] sm:$0xff]
    %v142 = vld [vmem:[%s129 + $0x60] sm:$0xff]
    %v143 = vld [vmem:[%s129 + $0x68] sm:$0xff]
    %v144 = vld [vmem:[%s129 + $0x70] sm:$0xff]
    %v145 = vld [vmem:[%s129 + $0x78] sm:$0xff]
    %s146 = scalar_lea.vmem %s2, 1
    %v147 = vld [vmem:[%s146] sm:$0x1]
    %v149 = vlaneseq
    %v150 = vshrl.u32 %v149, 7
    %v151 = vsub.s32 0, %v150
    %v152 = vrot.slane %v147, %v151
    %154 = vmatprep.subr.mxu0 0.0
    %155 = vmatpush1.msra.mxu0 %v130
    %156 = vmatprep.subr.mxu0 0.0
    %157 = vmatpush1.msra.mxu0 %v131
    %158 = vmatprep.subr.mxu0 0.0
    %159 = vmatpush1.msra.mxu0 %v132
    %160 = vmatprep.subr.mxu0 0.0
    %161 = vmatpush1.msra.mxu0 %v133
    %162 = vmatprep.subr.mxu0 0.0
    %163 = vmatpush1.msra.mxu0 %v134
    %164 = vmatprep.subr.mxu0 0.0
    %165 = vmatpush1.msra.mxu0 %v135
    %166 = vmatprep.subr.mxu0 0.0
    %167 = vmatpush1.msra.mxu0 %v136
    %168 = vmatprep.subr.mxu0 0.0
    %169 = vmatpush1.msra.mxu0 %v137
    %170 = vmatprep.subr.mxu0 0.0
    %171 = vmatpush1.msra.mxu0 %v138
    %172 = vmatprep.subr.mxu0 0.0
    %173 = vmatpush1.msra.mxu0 %v139
    %174 = vmatprep.subr.mxu0 0.0
    %175 = vmatpush1.msra.mxu0 %v140
    %176 = vmatprep.subr.mxu0 0.0
    %177 = vmatpush1.msra.mxu0 %v141
    %178 = vmatprep.subr.mxu0 0.0
    %179 = vmatpush1.msra.mxu0 %v142
    %180 = vmatprep.subr.mxu0 0.0
    %181 = vmatpush1.msra.mxu0 %v143
    %182 = vmatprep.subr.mxu0 0.0
    %183 = vmatpush1.msra.mxu0 %v144
    %184 = vmatprep.subr.mxu0 0.0
    %185 = vmatpush1.msra.mxu0 %v145
    %186 = vmatprep.subr.mxu0 0.0
    %187 = vmatpush1.msra.mxu0 0.0
    %188 = vmatprep.subr.mxu0 0.0
    %189 = vmatpush1.msra.mxu0 0.0
    %190 = vmatprep.subr.mxu0 0.0
    %191 = vmatpush1.msra.mxu0 0.0
    %192 = vmatprep.subr.mxu0 0.0
    %193 = vmatpush1.msra.mxu0 0.0
    %194 = vmatprep.subr.mxu0 0.0
    %195 = vmatpush1.msra.mxu0 0.0
    %196 = vmatprep.subr.mxu0 0.0
    %197 = vmatpush1.msra.mxu0 0.0
    %198 = vmatprep.subr.mxu0 0.0
    %199 = vmatpush1.msra.mxu0 0.0
    %200 = vmatprep.subr.mxu0 0.0
    %201 = vmatpush1.msra.mxu0 0.0
    %202 = vmatprep.subr.mxu0 0.0
    %203 = vmatpush1.msra.mxu0 0.0
    %204 = vmatprep.subr.mxu0 0.0
    %205 = vmatpush1.msra.mxu0 0.0
    %206 = vmatprep.subr.mxu0 0.0
    %207 = vmatpush1.msra.mxu0 0.0
    %208 = vmatprep.subr.mxu0 0.0
    %209 = vmatpush1.msra.mxu0 0.0
    %210 = vmatprep.subr.mxu0 0.0
    %211 = vmatpush1.msra.mxu0 0.0
    %212 = vmatprep.subr.mxu0 0.0
    %213 = vmatpush1.msra.mxu0 0.0
    %214 = vmatprep.subr.mxu0 0.0
    %215 = vmatpush1.msra.mxu0 0.0
    %216 = vmatprep.subr.mxu0 0.0
    %217 = vmatpush1.msra.mxu0 0.0
    %218 = vmatprep.mubr.f32.mxu0 0.0
    %219 = vmatmul.mubr.f32.gmra.mrb[0].mxu0 %v127
    %v220 = vpop.f32.mrb[0].mxu0
    %v221 = vadd.f32 %v152, %v220
    %v222 = vpop.f32.mrb[0].mxu0
    %223 = vdwg.mxu0
    %v224 = vxor.u32 %v221, 2147483648
    %v225 = vmul.f32 %v224, 1.442695
    %v226 = vpow.pop %v225
    %v227 = vadd.f32 %v226, 1.0
    %v228 = vrcp.pop %v227
    %v229 = vmul.f32 1.0, %v228
    %s230 = scalar_lea.vmem %s3, 8
    %231 = vst [vmem:[%s230] sm:$0xff] %v229
    %s232 = scalar_lea.vmem [#allocation2], 256
    %v233 = vld [vmem:[%s232] sm:$0xff]
    %v234 = vld [vmem:[%s232 + $0x8] sm:$0xff]
    %v235 = vld [vmem:[%s232 + $0x10] sm:$0xff]
    %v236 = vld [vmem:[%s232 + $0x18] sm:$0xff]
    %v237 = vld [vmem:[%s232 + $0x20] sm:$0xff]
    %v238 = vld [vmem:[%s232 + $0x28] sm:$0xff]
    %v239 = vld [vmem:[%s232 + $0x30] sm:$0xff]
    %v240 = vld [vmem:[%s232 + $0x38] sm:$0xff]
    %v241 = vld [vmem:[%s232 + $0x40] sm:$0xff]
    %v242 = vld [vmem:[%s232 + $0x48] sm:$0xff]
    %v243 = vld [vmem:[%s232 + $0x50] sm:$0xff]
    %v244 = vld [vmem:[%s232 + $0x58] sm:$0xff]
    %v245 = vld [vmem:[%s232 + $0x60] sm:$0xff]
    %v246 = vld [vmem:[%s232 + $0x68] sm:$0xff]
    %v247 = vld [vmem:[%s232 + $0x70] sm:$0xff]
    %v248 = vld [vmem:[%s232 + $0x78] sm:$0xff]
    %s249 = scalar_lea.vmem %s2, 2
    %v250 = vld [vmem:[%s249] sm:$0x1]
    %v252 = vlaneseq
    %v253 = vshrl.u32 %v252, 7
    %v254 = vsub.s32 0, %v253
    %v255 = vrot.slane %v250, %v254
    %257 = vmatprep.subr.mxu0 0.0
    %258 = vmatpush1.msra.mxu0 %v233
    %259 = vmatprep.subr.mxu0 0.0
    %260 = vmatpush1.msra.mxu0 %v234
    %261 = vmatprep.subr.mxu0 0.0
    %262 = vmatpush1.msra.mxu0 %v235
    %263 = vmatprep.subr.mxu0 0.0
    %264 = vmatpush1.msra.mxu0 %v236
    %265 = vmatprep.subr.mxu0 0.0
    %266 = vmatpush1.msra.mxu0 %v237
    %267 = vmatprep.subr.mxu0 0.0
    %268 = vmatpush1.msra.mxu0 %v238
    %269 = vmatprep.subr.mxu0 0.0
    %270 = vmatpush1.msra.mxu0 %v239
    %271 = vmatprep.subr.mxu0 0.0
    %272 = vmatpush1.msra.mxu0 %v240
    %273 = vmatprep.subr.mxu0 0.0
    %274 = vmatpush1.msra.mxu0 %v241
    %275 = vmatprep.subr.mxu0 0.0
    %276 = vmatpush1.msra.mxu0 %v242
    %277 = vmatprep.subr.mxu0 0.0
    %278 = vmatpush1.msra.mxu0 %v243
    %279 = vmatprep.subr.mxu0 0.0
    %280 = vmatpush1.msra.mxu0 %v244
    %281 = vmatprep.subr.mxu0 0.0
    %282 = vmatpush1.msra.mxu0 %v245
    %283 = vmatprep.subr.mxu0 0.0
    %284 = vmatpush1.msra.mxu0 %v246
    %285 = vmatprep.subr.mxu0 0.0
    %286 = vmatpush1.msra.mxu0 %v247
    %287 = vmatprep.subr.mxu0 0.0
    %288 = vmatpush1.msra.mxu0 %v248
    %289 = vmatprep.subr.mxu0 0.0
    %290 = vmatpush1.msra.mxu0 0.0
    %291 = vmatprep.subr.mxu0 0.0
    %292 = vmatpush1.msra.mxu0 0.0
    %293 = vmatprep.subr.mxu0 0.0
    %294 = vmatpush1.msra.mxu0 0.0
    %295 = vmatprep.subr.mxu0 0.0
    %296 = vmatpush1.msra.mxu0 0.0
    %297 = vmatprep.subr.mxu0 0.0
    %298 = vmatpush1.msra.mxu0 0.0
    %299 = vmatprep.subr.mxu0 0.0
    %300 = vmatpush1.msra.mxu0 0.0
    %301 = vmatprep.subr.mxu0 0.0
    %302 = vmatpush1.msra.mxu0 0.0
    %303 = vmatprep.subr.mxu0 0.0
    %304 = vmatpush1.msra.mxu0 0.0
    %305 = vmatprep.subr.mxu0 0.0
    %306 = vmatpush1.msra.mxu0 0.0
    %307 = vmatprep.subr.mxu0 0.0
    %308 = vmatpush1.msra.mxu0 0.0
    %309 = vmatprep.subr.mxu0 0.0
    %310 = vmatpush1.msra.mxu0 0.0
    %311 = vmatprep.subr.mxu0 0.0
    %312 = vmatpush1.msra.mxu0 0.0
    %313 = vmatprep.subr.mxu0 0.0
    %314 = vmatpush1.msra.mxu0 0.0
    %315 = vmatprep.subr.mxu0 0.0
    %316 = vmatpush1.msra.mxu0 0.0
    %317 = vmatprep.subr.mxu0 0.0
    %318 = vmatpush1.msra.mxu0 0.0
    %319 = vmatprep.subr.mxu0 0.0
    %320 = vmatpush1.msra.mxu0 0.0
    %321 = vmatprep.mubr.f32.mxu0 0.0
    %322 = vmatmul.mubr.f32.gmra.mrb[0].mxu0 %v229
    %v323 = vpop.f32.mrb[0].mxu0
    %v324 = vadd.f32 %v255, %v323
    %v325 = vpop.f32.mrb[0].mxu0
    %326 = vdwg.mxu0
    %v327 = vxor.u32 %v324, 2147483648
    %v328 = vmul.f32 %v327, 1.442695
    %v329 = vpow.pop %v328
    %v330 = vadd.f32 %v329, 1.0
    %v331 = vrcp.pop %v330
    %v332 = vmul.f32 1.0, %v331
    %s333 = scalar_lea.vmem %s3, 16
    %334 = vst [vmem:[%s333] sm:$0xff] %v332
    // Predicated region
    $region18: #{sparse_encoder_forward.1} parent=1 // pred_check
      _
    $region19: #{sparse_encoder_forward.1} parent=1 // pred_check_branch
      %336 = sbr.rel (0) target = $region21
    $region20: #{sparse_encoder_forward.1} parent=1 // pred_region
      _
    $region21: #{sparse_encoder_forward.1} parent=1 // pred_fallthru
      _
    // Predicated region
    $region22: #{sparse_encoder_forward.1} parent=1 // pred_check
      _
    $region23: #{sparse_encoder_forward.1} parent=1 // pred_check_branch
      %338 = sbr.rel (0) target = $region25
    $region24: #{sparse_encoder_forward.1} parent=1 // pred_region
      _
    $region25: #{sparse_encoder_forward.1} parent=1 // pred_fallthru
      _
    %339 = vsyncpa [#allocation3], 1

</llo_original>
